<compile_context>
chip_gen: v7x
topology: tpu7x:2x2x1
jax: 0.10.0
libtpu: 0.0.40
codegen_flags: <defaults>
</compile_context>

<pallas_src>
import jax
import jax.numpy as jnp
from jax.experimental import pallas as pl
from jax.experimental.pallas import tpu as pltpu

# ---- static config ---------------------------------------------------------
N_CUAD_LADO = 4
PIXELES_CUAD = 4
IMAGE_SIZE = N_CUAD_LADO * PIXELES_CUAD          # 16
FLAT_SIZE = IMAGE_SIZE * IMAGE_SIZE              # 256
ENCODING_DIM = 32
HIDDEN_DIM = 128
TB_MAX = 2048                                    # max rows per grid step (multiple of 8)

_LAYER_DIMS = ((FLAT_SIZE, HIDDEN_DIM),          # encoder dense 1
               (HIDDEN_DIM, ENCODING_DIM),       # encoder dense 2 (encoding)
               (ENCODING_DIM, HIDDEN_DIM),       # decoder dense 1
               (HIDDEN_DIM, FLAT_SIZE))          # decoder dense 2


def _autoencoder_kernel(x_ref,
                        w1_ref, b1_ref,
                        w2_ref, b2_ref,
                        w3_ref, b3_ref,
                        w4_ref, b4_ref,
                        out_ref):
    """Fused MLP autoencoder on one (TB, 256) batch tile.

    Weights arrive pre-cast to bf16 (full-rate MXU on v6e/v7x); only the streamed
    activations are cast in-kernel.  Accumulation is f32 via preferred_element_type;
    bias / ReLU / sigmoid run in f32 (safe on v5e, which has no bf16 VPU/EUP).
    """
    bf16 = jnp.bfloat16
    x = x_ref[...].astype(bf16)                                      # (TB, 256)

    # encoder dense 1: 256 -> 128, relu
    h = jnp.dot(x, w1_ref[...],
                preferred_element_type=jnp.float32) + b1_ref[...]
    h = jnp.maximum(h, 0.0)

    # encoder dense 2: 128 -> 32, relu  (encoding)
    h = jnp.dot(h.astype(bf16), w2_ref[...],
                preferred_element_type=jnp.float32) + b2_ref[...]
    h = jnp.maximum(h, 0.0)

    # decoder dense 1: 32 -> 128, relu
    h = jnp.dot(h.astype(bf16), w3_ref[...],
                preferred_element_type=jnp.float32) + b3_ref[...]
    h = jnp.maximum(h, 0.0)

    # decoder dense 2: 128 -> 256, sigmoid
    h = jnp.dot(h.astype(bf16), w4_ref[...],
                preferred_element_type=jnp.float32) + b4_ref[...]
    out_ref[...] = jax.nn.sigmoid(h).astype(out_ref.dtype)


def _choose_tile(n):
    """Batch-tile rows: multiple of 8, <= TB_MAX, and >=2 grid steps when the
    batch is large enough to split across the two v7x TensorCores."""
    min_steps = 2 if n >= 16 else 1
    steps = max(pl.cdiv(n, TB_MAX), min_steps)
    tb = max(8, ((pl.cdiv(n, steps) + 7) // 8) * 8)
    return tb


def autoencoder_forward(x_nchw, params):
    """x_nchw: (N, 1, 16, 16) float32 -> (N, 1, 16, 16) float32."""
    n = x_nchw.shape[0]
    x_flat = x_nchw.reshape(n, FLAT_SIZE)          # nn.Flatten (glue)

    tb = _choose_tile(n)
    grid = (pl.cdiv(n, tb),)                       # partial last block is masked by Pallas

    # Pre-cast loop-invariant weights to bf16 once (tiny arrays; removes per-step
    # in-kernel VPU casts and halves weight VMEM / DMA).  Biases stay f32.
    w_bf16 = {f"w{i}": params[f"w{i}"].astype(jnp.bfloat16)
              for i in range(1, len(_LAYER_DIMS) + 1)}

    def batch_map(i):
        return (i, 0)

    def const_map(i):                              # weights/biases: VMEM-resident
        return (0, 0)

    # NOTE(v5e-only, optional): pipeline_mode=pl.Buffered(3) on the x spec would deepen
    # input buffering for the HBM-bound v5e case; omitted here (neutral on v6e/v7x).
    in_specs = [pl.BlockSpec((tb, FLAT_SIZE), batch_map)]
    for din, dout in _LAYER_DIMS:
        in_specs.append(pl.BlockSpec((din, dout), const_map))   # weight (bf16)
        in_specs.append(pl.BlockSpec((1, dout), const_map))     # bias   (f32)

    layer_macs = sum(din * dout for din, dout in _LAYER_DIMS)           # 73728
    weight_bytes = 2 * layer_macs + 4 * sum(dout for _, dout in _LAYER_DIMS)
    cost = pl.CostEstimate(
        flops=2 * n * layer_macs,
        transcendentals=n * FLAT_SIZE,                                  # sigmoid
        bytes_accessed=n * 2 * FLAT_SIZE * 4 + weight_bytes,
    )

    out_flat = pl.pallas_call(
        _autoencoder_kernel,
        out_shape=jax.ShapeDtypeStruct((n, FLAT_SIZE), jnp.float32),
        grid=grid,
        in_specs=in_specs,
        out_specs=pl.BlockSpec((tb, FLAT_SIZE), batch_map),
        compiler_params=pltpu.CompilerParams(
            dimension_semantics=("parallel",),       # megacore on v7x
            vmem_limit_bytes=48 * 1024 * 1024,       # headroom under v7x 64 MiB VMEM
        ),
        cost_estimate=cost,
    )(x_flat,
      w_bf16["w1"], params["b1"],
      w_bf16["w2"], params["b2"],
      w_bf16["w3"], params["b3"],
      w_bf16["w4"], params["b4"])

    # nn.Unflatten(1, (1, 16, 16)) (glue)
    return out_flat.reshape(n, 1, IMAGE_SIZE, IMAGE_SIZE)


def init_params(key):
    """Deterministic synthetic init.  Weights stored (in, out); biases (1, out)."""
    params = {}
    keys = jax.random.split(key, len(_LAYER_DIMS))
    for i, ((din, dout), k) in enumerate(zip(_LAYER_DIMS, keys), start=1):
        kw, kb = jax.random.split(k)
        scale = 1.0 / jnp.sqrt(jnp.float32(din))   # matches PyTorch Linear bound
        params[f"w{i}"] = jax.random.uniform(kw, (din, dout), jnp.float32,
                                             minval=-scale, maxval=scale)
        params[f"b{i}"] = jax.random.uniform(kb, (1, dout), jnp.float32,
                                             minval=-scale, maxval=scale)
    return params


def reference_forward(x_nchw, params):
    """Pure-JAX f32 reference of the same forward pass (for correctness check)."""
    n = x_nchw.shape[0]
    h = x_nchw.reshape(n, FLAT_SIZE)
    h = jnp.maximum(h @ params["w1"] + params["b1"], 0.0)
    h = jnp.maximum(h @ params["w2"] + params["b2"], 0.0)
    h = jnp.maximum(h @ params["w3"] + params["b3"], 0.0)
    h = jax.nn.sigmoid(h @ params["w4"] + params["b4"])
    return h.reshape(n, 1, IMAGE_SIZE, IMAGE_SIZE)


if __name__ == "__main__":
    key = jax.random.PRNGKey(0)
    k_x, k_p = jax.random.split(key)

    x = jax.random.uniform(k_x, (2, 1, IMAGE_SIZE, IMAGE_SIZE), jnp.float32)
    params = init_params(k_p)

    out = jax.block_until_ready(autoencoder_forward(x, params))
    ref = jax.block_until_ready(reference_forward(x, params))

    assert out.shape == (2, 1, IMAGE_SIZE, IMAGE_SIZE)
    # bf16 matmul operands -> relaxed tolerance vs. f32 reference
    assert jnp.allclose(out, ref, atol=2e-2, rtol=2e-2), \
        f"max abs err {jnp.max(jnp.abs(out - ref))}"

    print("KERNEL_OK")
</pallas_src>

<mosaic_0001>
module attributes {stable_mosaic.version = 11 : i64} {
  func.func @_autoencoder_kernel(%arg0: i32, %arg1: memref<8x256xf32, #tpu.memory_space<vmem>>, %arg2: memref<256x128xbf16, #tpu.memory_space<vmem>>, %arg3: memref<1x128xf32, #tpu.memory_space<vmem>>, %arg4: memref<128x32xbf16, #tpu.memory_space<vmem>>, %arg5: memref<1x32xf32, #tpu.memory_space<vmem>>, %arg6: memref<32x128xbf16, #tpu.memory_space<vmem>>, %arg7: memref<1x128xf32, #tpu.memory_space<vmem>>, %arg8: memref<128x256xbf16, #tpu.memory_space<vmem>>, %arg9: memref<1x256xf32, #tpu.memory_space<vmem>>, %arg10: memref<8x256xf32, #tpu.memory_space<vmem>>) attributes {dimension_semantics = [#tpu.dimension_semantics<parallel>], iteration_bounds = array<i64: 1>, scalar_prefetch = 0 : i64, scratch_operands = 0 : i64, tpu.core_type = #tpu.core_type<tc>, window_params = [{transform_indices = @transform_0, window_bounds = array<i64: 8, 256>}, {pipeline_mode = #tpu.pipeline_mode<synchronous>, transform_indices = @transform_1, window_bounds = array<i64: 256, 128>}, {pipeline_mode = #tpu.pipeline_mode<synchronous>, transform_indices = @transform_2, window_bounds = array<i64: 1, 128>}, {pipeline_mode = #tpu.pipeline_mode<synchronous>, transform_indices = @transform_3, window_bounds = array<i64: 128, 32>}, {pipeline_mode = #tpu.pipeline_mode<synchronous>, transform_indices = @transform_4, window_bounds = array<i64: 1, 32>}, {pipeline_mode = #tpu.pipeline_mode<synchronous>, transform_indices = @transform_5, window_bounds = array<i64: 32, 128>}, {pipeline_mode = #tpu.pipeline_mode<synchronous>, transform_indices = @transform_6, window_bounds = array<i64: 1, 128>}, {pipeline_mode = #tpu.pipeline_mode<synchronous>, transform_indices = @transform_7, window_bounds = array<i64: 128, 256>}, {pipeline_mode = #tpu.pipeline_mode<synchronous>, transform_indices = @transform_8, window_bounds = array<i64: 1, 256>}, {transform_indices = @transform_9, window_bounds = array<i64: 8, 256>}]} {
    %c0 = arith.constant 0 : index
    %c0_0 = arith.constant 0 : index
    %0 = vector.load %arg1[%c0, %c0_0] : memref<8x256xf32, #tpu.memory_space<vmem>>, vector<8x256xf32>
    %1 = arith.truncf %0 : vector<8x256xf32> to vector<8x256xbf16>
    %c0_1 = arith.constant 0 : index
    %c0_2 = arith.constant 0 : index
    %2 = vector.load %arg2[%c0_1, %c0_2] : memref<256x128xbf16, #tpu.memory_space<vmem>>, vector<256x128xbf16>
    %cst = arith.constant dense<0.000000e+00> : vector<8x128xf32>
    %3 = tpu.matmul %1, %2, %cst {dimension_numbers = #tpu.dot_dimension_numbers<[1], [0], [0], [1], [0, 0, 1, 1], [], []>} : vector<8x256xbf16>, vector<256x128xbf16>, vector<8x128xf32> -> vector<8x128xf32>
    %c0_3 = arith.constant 0 : index
    %c0_4 = arith.constant 0 : index
    %4 = vector.load %arg3[%c0_3, %c0_4] : memref<1x128xf32, #tpu.memory_space<vmem>>, vector<1x128xf32>
    %5 = vector.broadcast %4 : vector<1x128xf32> to vector<8x128xf32>
    %6 = arith.addf %3, %5 : vector<8x128xf32>
    %cst_5 = arith.constant 0.000000e+00 : f32
    %7 = vector.broadcast %cst_5 : f32 to vector<8x128xf32>
    %8 = arith.maximumf %6, %7 : vector<8x128xf32>
    %9 = arith.truncf %8 : vector<8x128xf32> to vector<8x128xbf16>
    %c0_6 = arith.constant 0 : index
    %c0_7 = arith.constant 0 : index
    %10 = vector.load %arg4[%c0_6, %c0_7] : memref<128x32xbf16, #tpu.memory_space<vmem>>, vector<128x32xbf16>
    %cst_8 = arith.constant dense<0.000000e+00> : vector<8x32xf32>
    %11 = tpu.matmul %9, %10, %cst_8 {dimension_numbers = #tpu.dot_dimension_numbers<[1], [0], [0], [1], [0, 0, 1, 1], [], []>} : vector<8x128xbf16>, vector<128x32xbf16>, vector<8x32xf32> -> vector<8x32xf32>
    %c0_9 = arith.constant 0 : index
    %c0_10 = arith.constant 0 : index
    %12 = vector.load %arg5[%c0_9, %c0_10] : memref<1x32xf32, #tpu.memory_space<vmem>>, vector<1x32xf32>
    %13 = vector.broadcast %12 : vector<1x32xf32> to vector<8x32xf32>
    %14 = arith.addf %11, %13 : vector<8x32xf32>
    %cst_11 = arith.constant 0.000000e+00 : f32
    %15 = vector.broadcast %cst_11 : f32 to vector<8x32xf32>
    %16 = arith.maximumf %14, %15 : vector<8x32xf32>
    %17 = arith.truncf %16 : vector<8x32xf32> to vector<8x32xbf16>
    %c0_12 = arith.constant 0 : index
    %c0_13 = arith.constant 0 : index
    %18 = vector.load %arg6[%c0_12, %c0_13] : memref<32x128xbf16, #tpu.memory_space<vmem>>, vector<32x128xbf16>
    %cst_14 = arith.constant dense<0.000000e+00> : vector<8x128xf32>
    %19 = tpu.matmul %17, %18, %cst_14 {dimension_numbers = #tpu.dot_dimension_numbers<[1], [0], [0], [1], [0, 0, 1, 1], [], []>} : vector<8x32xbf16>, vector<32x128xbf16>, vector<8x128xf32> -> vector<8x128xf32>
    %c0_15 = arith.constant 0 : index
    %c0_16 = arith.constant 0 : index
    %20 = vector.load %arg7[%c0_15, %c0_16] : memref<1x128xf32, #tpu.memory_space<vmem>>, vector<1x128xf32>
    %21 = vector.broadcast %20 : vector<1x128xf32> to vector<8x128xf32>
    %22 = arith.addf %19, %21 : vector<8x128xf32>
    %cst_17 = arith.constant 0.000000e+00 : f32
    %23 = vector.broadcast %cst_17 : f32 to vector<8x128xf32>
    %24 = arith.maximumf %22, %23 : vector<8x128xf32>
    %25 = arith.truncf %24 : vector<8x128xf32> to vector<8x128xbf16>
    %c0_18 = arith.constant 0 : index
    %c0_19 = arith.constant 0 : index
    %26 = vector.load %arg8[%c0_18, %c0_19] : memref<128x256xbf16, #tpu.memory_space<vmem>>, vector<128x256xbf16>
    %cst_20 = arith.constant dense<0.000000e+00> : vector<8x256xf32>
    %27 = tpu.matmul %25, %26, %cst_20 {dimension_numbers = #tpu.dot_dimension_numbers<[1], [0], [0], [1], [0, 0, 1, 1], [], []>} : vector<8x128xbf16>, vector<128x256xbf16>, vector<8x256xf32> -> vector<8x256xf32>
    %c0_21 = arith.constant 0 : index
    %c0_22 = arith.constant 0 : index
    %28 = vector.load %arg9[%c0_21, %c0_22] : memref<1x256xf32, #tpu.memory_space<vmem>>, vector<1x256xf32>
    %29 = vector.broadcast %28 : vector<1x256xf32> to vector<8x256xf32>
    %30 = arith.addf %27, %29 : vector<8x256xf32>
    %31 = arith.negf %30 : vector<8x256xf32>
    %32 = math.exp %31 : vector<8x256xf32>
    %cst_23 = arith.constant 1.000000e+00 : f32
    %33 = vector.broadcast %cst_23 : f32 to vector<8x256xf32>
    %34 = arith.addf %33, %32 : vector<8x256xf32>
    %35 = arith.divf %33, %34 : vector<8x256xf32>
    %c0_24 = arith.constant 0 : index
    %c0_25 = arith.constant 0 : index
    %36 = vector.load %arg10[%c0_24, %c0_25] : memref<8x256xf32, #tpu.memory_space<vmem>>, vector<8x256xf32>
    tpu.vector_store %arg10[%c0_24, %c0_25], %35 {strides = array<i32>} : memref<8x256xf32, #tpu.memory_space<vmem>>, vector<8x256xf32>,
    return
  }
  func.func @transform_0(%arg0: i32) -> (i32, i32) {
    %c0_i32 = arith.constant 0 : i32
    %c0_i32_0 = arith.constant 0 : i32
    return %arg0, %c0_i32 : i32, i32
  }
  func.func @transform_1(%arg0: i32) -> (i32, i32) {
    %c0_i32 = arith.constant 0 : i32
    %c0_i32_0 = arith.constant 0 : i32
    %c0_i32_1 = arith.constant 0 : i32
    return %c0_i32, %c0_i32_0 : i32, i32
  }
  func.func @transform_2(%arg0: i32) -> (i32, i32) {
    %c0_i32 = arith.constant 0 : i32
    %c0_i32_0 = arith.constant 0 : i32
    %c0_i32_1 = arith.constant 0 : i32
    return %c0_i32, %c0_i32_0 : i32, i32
  }
  func.func @transform_3(%arg0: i32) -> (i32, i32) {
    %c0_i32 = arith.constant 0 : i32
    %c0_i32_0 = arith.constant 0 : i32
    %c0_i32_1 = arith.constant 0 : i32
    return %c0_i32, %c0_i32_0 : i32, i32
  }
  func.func @transform_4(%arg0: i32) -> (i32, i32) {
    %c0_i32 = arith.constant 0 : i32
    %c0_i32_0 = arith.constant 0 : i32
    %c0_i32_1 = arith.constant 0 : i32
    return %c0_i32, %c0_i32_0 : i32, i32
  }
  func.func @transform_5(%arg0: i32) -> (i32, i32) {
    %c0_i32 = arith.constant 0 : i32
    %c0_i32_0 = arith.constant 0 : i32
    %c0_i32_1 = arith.constant 0 : i32
    return %c0_i32, %c0_i32_0 : i32, i32
  }
  func.func @transform_6(%arg0: i32) -> (i32, i32) {
    %c0_i32 = arith.constant 0 : i32
    %c0_i32_0 = arith.constant 0 : i32
    %c0_i32_1 = arith.constant 0 : i32
    return %c0_i32, %c0_i32_0 : i32, i32
  }
  func.func @transform_7(%arg0: i32) -> (i32, i32) {
    %c0_i32 = arith.constant 0 : i32
    %c0_i32_0 = arith.constant 0 : i32
    %c0_i32_1 = arith.constant 0 : i32
    return %c0_i32, %c0_i32_0 : i32, i32
  }
  func.func @transform_8(%arg0: i32) -> (i32, i32) {
    %c0_i32 = arith.constant 0 : i32
    %c0_i32_0 = arith.constant 0 : i32
    %c0_i32_1 = arith.constant 0 : i32
    return %c0_i32, %c0_i32_0 : i32, i32
  }
  func.func @transform_9(%arg0: i32) -> (i32, i32) {
    %c0_i32 = arith.constant 0 : i32
    %c0_i32_0 = arith.constant 0 : i32
    return %arg0, %c0_i32 : i32, i32
  }
}

</mosaic_0001>

<llo_original>
// kernel: tpu_custom_call.1
$region0: #{tpu_custom_call.1}
  #allocation0 [shape = 'u32[]', space=smem, size = 0x4, offset = 0x4, fixed_abs, tag = 'smem constant byte address 0x4 - core index']
  #allocation1 [shape = 'u32[144,128]{1,0:T(1,128)}', space=vmem, size = 0x12000, scoped, tag = 'internal scratch']
  %s0 = inlined_call_operand.vmem [shape: f32[2,256], index: 0, kind: input, shape index: {}]
  %s1 = inlined_call_operand.hbm [shape: bf16[256,128], index: 1, kind: input, shape index: {}]
  %s2 = inlined_call_operand.vmem [shape: f32[1,128], index: 2, kind: input, shape index: {}]
  %s3 = inlined_call_operand.vmem [shape: bf16[128,32], index: 3, kind: input, shape index: {}]
  %s4 = inlined_call_operand.vmem [shape: f32[1,32], index: 4, kind: input, shape index: {}]
  %s5 = inlined_call_operand.vmem [shape: bf16[32,128], index: 5, kind: input, shape index: {}]
  %s6 = inlined_call_operand.vmem [shape: f32[1,128], index: 6, kind: input, shape index: {}]
  %s7 = inlined_call_operand.hbm [shape: bf16[128,256], index: 7, kind: input, shape index: {}]
  %s8 = inlined_call_operand.vmem [shape: f32[1,256], index: 8, kind: input, shape index: {}]
  %s9 = inlined_call_operand.hbm [shape: f32[2,256], index: 9, kind: output, shape index: {}]
  %s10 = sld [smem:[#allocation0]]
  $region54: #{tpu_custom_call.1} parent=0
    _
  %s12 = ssub.s32 1, %s10
  %s13 = scalar_select 0, %s12, %s10
  $region1: #{tpu_custom_call.1} parent=0
    #allocation2 [shape = 'u8[65536]{0}', space=vmem, size = 0x10000, scoped, tag = 'input window, operand 1, single buffered']
    #allocation3 [shape = 's32[1]{0}', space=sflag, size = 0x4, scoped, tag = 'scoped memory for tpu_custom_call.1']
    #allocation4 [shape = 's32[1]{0}', space=sflag, size = 0x4, scoped, tag = 'scoped memory for tpu_custom_call.1']
    #allocation5 [shape = 'u8[65536]{0}', space=vmem, size = 0x10000, scoped, tag = 'input window, operand 7, single buffered']
    #allocation6 [shape = 's32[1]{0}', space=sflag, size = 0x4, scoped, tag = 'scoped memory for tpu_custom_call.1']
    #allocation7 [shape = 'u8[8192]{0}', space=vmem, size = 0x2000, scoped, tag = 'output window, operand 0, single buffered']
    %14 = vsyncpa [#allocation3], 0
    %15 = vsyncpa [#allocation6], 0
    %16 = vsyncpa [#allocation4], 0
    // Predicated region
    $region2: #{tpu_custom_call.1} parent=1 // pred_check
      _
    $region3: #{tpu_custom_call.1} parent=1 // pred_check_branch
      %18 = sbr.rel (0) target = $region5
    $region4: #{tpu_custom_call.1} parent=1 // pred_region
      _
    $region5: #{tpu_custom_call.1} parent=1 // pred_fallthru
      _
    // Predicated region
    $region6: #{tpu_custom_call.1} parent=1 // pred_check
      _
    $region7: #{tpu_custom_call.1} parent=1 // pred_check_branch
      %20 = sbr.rel (0) target = $region9
    $region8: #{tpu_custom_call.1} parent=1 // pred_region
      %s22 = ssub.s32 2048, 2048
      %23 = vsyncadd [#allocation3], %s22
      %s24 = sshll.u32 [#allocation2], 4
      %s25 = int_to_ptr.vmem [resolvable:$true] %s24
      %30 = dma.hbm_to_vmem [thread:$0]  %s1, 2048, %s25, [#allocation3], 64, 64, 4
    $region9: #{tpu_custom_call.1} parent=1 // pred_fallthru
      _
    // Predicated region
    $region10: #{tpu_custom_call.1} parent=1 // pred_check
      _
    $region11: #{tpu_custom_call.1} parent=1 // pred_check_branch
      %32 = sbr.rel (0) target = $region13
    $region12: #{tpu_custom_call.1} parent=1 // pred_region
      _
    $region13: #{tpu_custom_call.1} parent=1 // pred_fallthru
      _
    // Predicated region
    $region14: #{tpu_custom_call.1} parent=1 // pred_check
      _
    $region15: #{tpu_custom_call.1} parent=1 // pred_check_branch
      %34 = sbr.rel (0) target = $region17
    $region16: #{tpu_custom_call.1} parent=1 // pred_region
      _
    $region17: #{tpu_custom_call.1} parent=1 // pred_fallthru
      _
    // Predicated region
    $region18: #{tpu_custom_call.1} parent=1 // pred_check
      _
    $region19: #{tpu_custom_call.1} parent=1 // pred_check_branch
      %36 = sbr.rel (0) target = $region21
    $region20: #{tpu_custom_call.1} parent=1 // pred_region
      _
    $region21: #{tpu_custom_call.1} parent=1 // pred_fallthru
      _
    // Predicated region
    $region22: #{tpu_custom_call.1} parent=1 // pred_check
      _
    $region23: #{tpu_custom_call.1} parent=1 // pred_check_branch
      %38 = sbr.rel (0) target = $region25
    $region24: #{tpu_custom_call.1} parent=1 // pred_region
      _
    $region25: #{tpu_custom_call.1} parent=1 // pred_fallthru
      _
    // Predicated region
    $region26: #{tpu_custom_call.1} parent=1 // pred_check
      _
    $region27: #{tpu_custom_call.1} parent=1 // pred_check_branch
      %40 = sbr.rel (0) target = $region29
    $region28: #{tpu_custom_call.1} parent=1 // pred_region
      _
    $region29: #{tpu_custom_call.1} parent=1 // pred_fallthru
      _
    // Predicated region
    $region30: #{tpu_custom_call.1} parent=1 // pred_check
      _
    $region31: #{tpu_custom_call.1} parent=1 // pred_check_branch
      %42 = sbr.rel (0) target = $region33
    $region32: #{tpu_custom_call.1} parent=1 // pred_region
      %s44 = ssub.s32 2048, 2048
      %45 = vsyncadd [#allocation6], %s44
      %s46 = sshll.u32 [#allocation5], 4
      %s47 = int_to_ptr.vmem [resolvable:$true] %s46
      %52 = dma.hbm_to_vmem [thread:$0]  %s7, 2048, %s47, [#allocation6], 128, 128, 8
    $region33: #{tpu_custom_call.1} parent=1 // pred_fallthru
      _
    // Predicated region
    $region34: #{tpu_custom_call.1} parent=1 // pred_check
      _
    $region35: #{tpu_custom_call.1} parent=1 // pred_check_branch
      %54 = sbr.rel (0) target = $region37
    $region36: #{tpu_custom_call.1} parent=1 // pred_region
      _
    $region37: #{tpu_custom_call.1} parent=1 // pred_fallthru
      _
    // Predicated region
    $region38: #{tpu_custom_call.1} parent=1 // pred_check
      _
    $region39: #{tpu_custom_call.1} parent=1 // pred_check_branch
      %56 = sbr.rel (0) target = $region41
    $region40: #{tpu_custom_call.1} parent=1 // pred_region
      %57 = dma.done [#allocation3], 2048
    $region41: #{tpu_custom_call.1} parent=1 // pred_fallthru
      _
    // Predicated region
    $region42: #{tpu_custom_call.1} parent=1 // pred_check
      _
    $region43: #{tpu_custom_call.1} parent=1 // pred_check_branch
      %59 = sbr.rel (0) target = $region45
    $region44: #{tpu_custom_call.1} parent=1 // pred_region
      %60 = dma.done [#allocation6], 2048
    $region45: #{tpu_custom_call.1} parent=1 // pred_fallthru
      _
    %v62 = vld [vmem:[%s0] sm:$0xf]
    %v63 = vld [vmem:[%s0 + $0x4] sm:$0xf]
    %v64 = vld [vmem:[%s0 + $0x8] sm:$0xf]
    %v65 = vld [vmem:[%s0 + $0xc] sm:$0xf]
    %v70 = vcombine.low %v62, %v63
    %v71 = vcombine.low %v64, %v65
    %v73 = vunpack.c.l.s4 1983009808
    %v74 = vunpack.c.0.s8 %v73
    %v75 = vlaneseq
    %v76 = vshrl.u32 %v75, 7
    %v77 = vsub.s32 %v74, %v76
    %v78 = vrot.slane %v70, %v77
    %v80 = vunpack.c.l.s4 1983009808
    %v81 = vunpack.c.0.s8 %v80
    %v82 = vlaneseq
    %v83 = vshrl.u32 %v82, 7
    %v84 = vsub.s32 %v81, %v83
    %v85 = vrot.slane %v71, %v84
    %v86 = vcombine.low %v78, %v85
    %v87 = vcombine.high %v78, %v85
    %v90 = vpack.c.bf16 %v86, %v86
    %v91 = vpack.c.bf16 %v87, %v87
    %v92 = vld [vmem:[#allocation2] sm:$0xf]
    %v93 = vld [vmem:[#allocation2 + $0x4] sm:$0xf]
    %v94 = vld [vmem:[#allocation2 + $0x8] sm:$0xf]
    %v95 = vld [vmem:[#allocation2 + $0xc] sm:$0xf]
    %v96 = vld [vmem:[#allocation2 + $0x10] sm:$0xf]
    %v97 = vld [vmem:[#allocation2 + $0x14] sm:$0xf]
    %v98 = vld [vmem:[#allocation2 + $0x18] sm:$0xf]
    %v99 = vld [vmem:[#allocation2 + $0x1c] sm:$0xf]
    %v100 = vld [vmem:[#allocation2 + $0x20] sm:$0xf]
    %v101 = vld [vmem:[#allocation2 + $0x24] sm:$0xf]
    %v102 = vld [vmem:[#allocation2 + $0x28] sm:$0xf]
    %v103 = vld [vmem:[#allocation2 + $0x2c] sm:$0xf]
    %v104 = vld [vmem:[#allocation2 + $0x30] sm:$0xf]
    %v105 = vld [vmem:[#allocation2 + $0x34] sm:$0xf]
    %v106 = vld [vmem:[#allocation2 + $0x38] sm:$0xf]
    %v107 = vld [vmem:[#allocation2 + $0x3c] sm:$0xf]
    %v108 = vld [vmem:[#allocation2 + $0x40] sm:$0xf]
    %v109 = vld [vmem:[#allocation2 + $0x44] sm:$0xf]
    %v110 = vld [vmem:[#allocation2 + $0x48] sm:$0xf]
    %v111 = vld [vmem:[#allocation2 + $0x4c] sm:$0xf]
    %v112 = vld [vmem:[#allocation2 + $0x50] sm:$0xf]
    %v113 = vld [vmem:[#allocation2 + $0x54] sm:$0xf]
    %v114 = vld [vmem:[#allocation2 + $0x58] sm:$0xf]
    %v115 = vld [vmem:[#allocation2 + $0x5c] sm:$0xf]
    %v116 = vld [vmem:[#allocation2 + $0x60] sm:$0xf]
    %v117 = vld [vmem:[#allocation2 + $0x64] sm:$0xf]
    %v118 = vld [vmem:[#allocation2 + $0x68] sm:$0xf]
    %v119 = vld [vmem:[#allocation2 + $0x6c] sm:$0xf]
    %v120 = vld [vmem:[#allocation2 + $0x70] sm:$0xf]
    %v121 = vld [vmem:[#allocation2 + $0x74] sm:$0xf]
    %v122 = vld [vmem:[#allocation2 + $0x78] sm:$0xf]
    %v123 = vld [vmem:[#allocation2 + $0x7c] sm:$0xf]
    %v124 = vld [vmem:[%s2] sm:$0x1]
    %v126 = vlaneseq
    %v127 = vshrl.u32 %v126, 7
    %v128 = vsub.s32 0, %v127
    %v129 = vrot.slane %v124, %v128
    %v163 = vunpack.c.l.b16 %v92
    %v164 = vunpack.c.l.b16 %v93
    %v165 = vunpack.c.l.b16 %v94
    %v166 = vunpack.c.l.b16 %v95
    %v167 = vunpack.c.l.b16 %v96
    %v168 = vunpack.c.l.b16 %v97
    %v169 = vunpack.c.l.b16 %v98
    %v170 = vunpack.c.l.b16 %v99
    %v171 = vunpack.c.l.b16 %v100
    %v172 = vunpack.c.l.b16 %v101
    %v173 = vunpack.c.l.b16 %v102
    %v174 = vunpack.c.l.b16 %v103
    %v175 = vunpack.c.l.b16 %v104
    %v176 = vunpack.c.l.b16 %v105
    %v177 = vunpack.c.l.b16 %v106
    %v178 = vunpack.c.l.b16 %v107
    %v179 = vunpack.c.l.b16 %v108
    %v180 = vunpack.c.l.b16 %v109
    %v181 = vunpack.c.l.b16 %v110
    %v182 = vunpack.c.l.b16 %v111
    %v183 = vunpack.c.l.b16 %v112
    %v184 = vunpack.c.l.b16 %v113
    %v185 = vunpack.c.l.b16 %v114
    %v186 = vunpack.c.l.b16 %v115
    %v187 = vunpack.c.l.b16 %v116
    %v188 = vunpack.c.l.b16 %v117
    %v189 = vunpack.c.l.b16 %v118
    %v190 = vunpack.c.l.b16 %v119
    %v191 = vunpack.c.l.b16 %v120
    %v192 = vunpack.c.l.b16 %v121
    %v193 = vunpack.c.l.b16 %v122
    %v194 = vunpack.c.l.b16 %v123
    %v195 = vpack.c.b16 %v164, %v163
    %v196 = vpack.c.b16 %v166, %v165
    %v197 = vpack.c.b16 %v168, %v167
    %v198 = vpack.c.b16 %v170, %v169
    %v199 = vpack.c.b16 %v172, %v171
    %v200 = vpack.c.b16 %v174, %v173
    %v201 = vpack.c.b16 %v176, %v175
    %v202 = vpack.c.b16 %v178, %v177
    %v203 = vpack.c.b16 %v180, %v179
    %v204 = vpack.c.b16 %v182, %v181
    %v205 = vpack.c.b16 %v184, %v183
    %v206 = vpack.c.b16 %v186, %v185
    %v207 = vpack.c.b16 %v188, %v187
    %v208 = vpack.c.b16 %v190, %v189
    %v209 = vpack.c.b16 %v192, %v191
    %v210 = vpack.c.b16 %v194, %v193
    %227 = vmatprep.subr.bf16.mxu0 0
    %228 = vmatpush1.bf16.msra.mxu0 %v195
    %229 = vmatprep.subr.bf16.mxu0 0
    %230 = vmatpush1.bf16.msra.mxu0 %v196
    %231 = vmatprep.subr.bf16.mxu0 0
    %232 = vmatpush1.bf16.msra.mxu0 %v197
    %233 = vmatprep.subr.bf16.mxu0 0
    %234 = vmatpush1.bf16.msra.mxu0 %v198
    %235 = vmatprep.subr.bf16.mxu0 0
    %236 = vmatpush1.bf16.msra.mxu0 %v199
    %237 = vmatprep.subr.bf16.mxu0 0
    %238 = vmatpush1.bf16.msra.mxu0 %v200
    %239 = vmatprep.subr.bf16.mxu0 0
    %240 = vmatpush1.bf16.msra.mxu0 %v201
    %241 = vmatprep.subr.bf16.mxu0 0
    %242 = vmatpush1.bf16.msra.mxu0 %v202
    %243 = vmatprep.subr.bf16.mxu0 0
    %244 = vmatpush1.bf16.msra.mxu0 %v203
    %245 = vmatprep.subr.bf16.mxu0 0
    %246 = vmatpush1.bf16.msra.mxu0 %v204
    %247 = vmatprep.subr.bf16.mxu0 0
    %248 = vmatpush1.bf16.msra.mxu0 %v205
    %249 = vmatprep.subr.bf16.mxu0 0
    %250 = vmatpush1.bf16.msra.mxu0 %v206
    %251 = vmatprep.subr.bf16.mxu0 0
    %252 = vmatpush1.bf16.msra.mxu0 %v207
    %253 = vmatprep.subr.bf16.mxu0 0
    %254 = vmatpush1.bf16.msra.mxu0 %v208
    %255 = vmatprep.subr.bf16.mxu0 0
    %256 = vmatpush1.bf16.msra.mxu0 %v209
    %257 = vmatprep.subr.bf16.mxu0 0
    %258 = vmatpush1.bf16.msra.mxu0 %v210
    %259 = vmatprep.mubr.bf16.mxu0 %v91
    %260 = vmatmul.mubr.bf16.gmra.mrb[0].mxu0 %v90
    %v261 = vpop.f32.mrb[0].mxu0
    %v262 = vadd.f32 %v129, %v261
    %v263 = vpop.f32.mrb[0].mxu0
    %v264 = vpop.f32.mrb[0].mxu0
    %v265 = vpop.f32.mrb[0].mxu0
    %266 = vdwg.mxu0
    %v267 = vmax.f32 %v262, 0.0
    %v268 = vpack.c.bf16 %v267, %v267
    %v269 = vld [vmem:[%s3] sm:$0xf]
    %v270 = vld [vmem:[%s3 + $0x4] sm:$0xf]
    %v271 = vld [vmem:[%s3 + $0x8] sm:$0xf]
    %v272 = vld [vmem:[%s3 + $0xc] sm:$0xf]
    %v273 = vld [vmem:[%s3 + $0x10] sm:$0xf]
    %v274 = vld [vmem:[%s3 + $0x14] sm:$0xf]
    %v275 = vld [vmem:[%s3 + $0x18] sm:$0xf]
    %v276 = vld [vmem:[%s3 + $0x1c] sm:$0xf]
    %v277 = vld [vmem:[%s3 + $0x20] sm:$0xf]
    %v278 = vld [vmem:[%s3 + $0x24] sm:$0xf]
    %v279 = vld [vmem:[%s3 + $0x28] sm:$0xf]
    %v280 = vld [vmem:[%s3 + $0x2c] sm:$0xf]
    %v281 = vld [vmem:[%s3 + $0x30] sm:$0xf]
    %v282 = vld [vmem:[%s3 + $0x34] sm:$0xf]
    %v283 = vld [vmem:[%s3 + $0x38] sm:$0xf]
    %v284 = vld [vmem:[%s3 + $0x3c] sm:$0xf]
    %v285 = vld [vmem:[%s4] sm:$0x1]
    %v287 = vlaneseq
    %v288 = vshrl.u32 %v287, 7
    %v289 = vsub.s32 0, %v288
    %v290 = vrot.slane %v285, %v289
    %v308 = vunpack.c.l.b16 %v269
    %v309 = vunpack.c.l.b16 %v270
    %v310 = vunpack.c.l.b16 %v271
    %v311 = vunpack.c.l.b16 %v272
    %v312 = vunpack.c.l.b16 %v273
    %v313 = vunpack.c.l.b16 %v274
    %v314 = vunpack.c.l.b16 %v275
    %v315 = vunpack.c.l.b16 %v276
    %v316 = vunpack.c.l.b16 %v277
    %v317 = vunpack.c.l.b16 %v278
    %v318 = vunpack.c.l.b16 %v279
    %v319 = vunpack.c.l.b16 %v280
    %v320 = vunpack.c.l.b16 %v281
    %v321 = vunpack.c.l.b16 %v282
    %v322 = vunpack.c.l.b16 %v283
    %v323 = vunpack.c.l.b16 %v284
    %v324 = vpack.c.b16 %v309, %v308
    %v325 = vpack.c.b16 %v311, %v310
    %v326 = vpack.c.b16 %v313, %v312
    %v327 = vpack.c.b16 %v315, %v314
    %v328 = vpack.c.b16 %v317, %v316
    %v329 = vpack.c.b16 %v319, %v318
    %v330 = vpack.c.b16 %v321, %v320
    %v331 = vpack.c.b16 %v323, %v322
    %340 = vmatprep.subr.bf16.mxu0 0
    %341 = vmatpush1.bf16.msra.mxu0 %v324
    %342 = vmatprep.subr.bf16.mxu0 0
    %343 = vmatpush1.bf16.msra.mxu0 %v325
    %344 = vmatprep.subr.bf16.mxu0 0
    %345 = vmatpush1.bf16.msra.mxu0 %v326
    %346 = vmatprep.subr.bf16.mxu0 0
    %347 = vmatpush1.bf16.msra.mxu0 %v327
    %348 = vmatprep.subr.bf16.mxu0 0
    %349 = vmatpush1.bf16.msra.mxu0 %v328
    %350 = vmatprep.subr.bf16.mxu0 0
    %351 = vmatpush1.bf16.msra.mxu0 %v329
    %352 = vmatprep.subr.bf16.mxu0 0
    %353 = vmatpush1.bf16.msra.mxu0 %v330
    %354 = vmatprep.subr.bf16.mxu0 0
    %355 = vmatpush1.bf16.msra.mxu0 %v331
    %356 = vmatprep.subr.bf16.mxu0 0
    %357 = vmatpush1.bf16.msra.mxu0 0
    %358 = vmatprep.subr.bf16.mxu0 0
    %359 = vmatpush1.bf16.msra.mxu0 0
    %360 = vmatprep.subr.bf16.mxu0 0
    %361 = vmatpush1.bf16.msra.mxu0 0
    %362 = vmatprep.subr.bf16.mxu0 0
    %363 = vmatpush1.bf16.msra.mxu0 0
    %364 = vmatprep.subr.bf16.mxu0 0
    %365 = vmatpush1.bf16.msra.mxu0 0
    %366 = vmatprep.subr.bf16.mxu0 0
    %367 = vmatpush1.bf16.msra.mxu0 0
    %368 = vmatprep.subr.bf16.mxu0 0
    %369 = vmatpush1.bf16.msra.mxu0 0
    %370 = vmatprep.subr.bf16.mxu0 0
    %371 = vmatpush1.bf16.msra.mxu0 0
    %372 = vmatprep.mubr.bf16.mxu0 0
    %373 = vmatmul.mubr.bf16.gmra.mrb[0].mxu0 %v268
    %v374 = vpop.f32.mrb[0].mxu0
    %v375 = vadd.f32 %v290, %v374
    %v376 = vpop.f32.mrb[0].mxu0
    %v377 = vpop.f32.mrb[0].mxu0
    %v378 = vpop.f32.mrb[0].mxu0
    %379 = vdwg.mxu0
    %v380 = vmax.f32 %v375, 0.0
    %v381 = vpack.c.bf16 %v380, %v380
    %v382 = vld [vmem:[%s5] sm:$0xf]
    %v383 = vld [vmem:[%s5 + $0x4] sm:$0xf]
    %v384 = vld [vmem:[%s5 + $0x8] sm:$0xf]
    %v385 = vld [vmem:[%s5 + $0xc] sm:$0xf]
    %v386 = vld [vmem:[%s6] sm:$0x1]
    %v388 = vlaneseq
    %v389 = vshrl.u32 %v388, 7
    %v390 = vsub.s32 0, %v389
    %v391 = vrot.slane %v386, %v390
    %v397 = vunpack.c.l.b16 %v382
    %v398 = vunpack.c.l.b16 %v383
    %v399 = vunpack.c.l.b16 %v384
    %v400 = vunpack.c.l.b16 %v385
    %v401 = vpack.c.b16 %v398, %v397
    %v402 = vpack.c.b16 %v400, %v399
    %vm405 = vcmask 261120
    %v407 = vsel %vm405, %v381, 0
    %409 = vmatprep.subr.bf16.mxu0 0
    %410 = vmatpush1.bf16.msra.mxu0 %v401
    %411 = vmatprep.subr.bf16.mxu0 0
    %412 = vmatpush1.bf16.msra.mxu0 %v402
    %413 = vmatprep.subr.bf16.mxu0 0
    %414 = vmatpush1.bf16.msra.mxu0 0
    %415 = vmatprep.subr.bf16.mxu0 0
    %416 = vmatpush1.bf16.msra.mxu0 0
    %417 = vmatprep.subr.bf16.mxu0 0
    %418 = vmatpush1.bf16.msra.mxu0 0
    %419 = vmatprep.subr.bf16.mxu0 0
    %420 = vmatpush1.bf16.msra.mxu0 0
    %421 = vmatprep.subr.bf16.mxu0 0
    %422 = vmatpush1.bf16.msra.mxu0 0
    %423 = vmatprep.subr.bf16.mxu0 0
    %424 = vmatpush1.bf16.msra.mxu0 0
    %425 = vmatprep.subr.bf16.mxu0 0
    %426 = vmatpush1.bf16.msra.mxu0 0
    %427 = vmatprep.subr.bf16.mxu0 0
    %428 = vmatpush1.bf16.msra.mxu0 0
    %429 = vmatprep.subr.bf16.mxu0 0
    %430 = vmatpush1.bf16.msra.mxu0 0
    %431 = vmatprep.subr.bf16.mxu0 0
    %432 = vmatpush1.bf16.msra.mxu0 0
    %433 = vmatprep.subr.bf16.mxu0 0
    %434 = vmatpush1.bf16.msra.mxu0 0
    %435 = vmatprep.subr.bf16.mxu0 0
    %436 = vmatpush1.bf16.msra.mxu0 0
    %437 = vmatprep.subr.bf16.mxu0 0
    %438 = vmatpush1.bf16.msra.mxu0 0
    %439 = vmatprep.subr.bf16.mxu0 0
    %440 = vmatpush1.bf16.msra.mxu0 0
    %441 = vmatprep.mubr.bf16.mxu0 0
    %442 = vmatmul.mubr.bf16.gmra.mrb[0].mxu0 %v407
    %v443 = vpop.f32.mrb[0].mxu0
    %v444 = vadd.f32 %v391, %v443
    %v445 = vpop.f32.mrb[0].mxu0
    %v446 = vpop.f32.mrb[0].mxu0
    %v447 = vpop.f32.mrb[0].mxu0
    %448 = vdwg.mxu0
    %v449 = vmax.f32 %v444, 0.0
    %v450 = vpack.c.bf16 %v449, %v449
    %v451 = vld [vmem:[#allocation5] sm:$0xff]
    %v452 = vld [vmem:[#allocation5 + $0x8] sm:$0xff]
    %v453 = vld [vmem:[#allocation5 + $0x10] sm:$0xff]
    %v454 = vld [vmem:[#allocation5 + $0x18] sm:$0xff]
    %v455 = vld [vmem:[#allocation5 + $0x20] sm:$0xff]
    %v456 = vld [vmem:[#allocation5 + $0x28] sm:$0xff]
    %v457 = vld [vmem:[#allocation5 + $0x30] sm:$0xff]
    %v458 = vld [vmem:[#allocation5 + $0x38] sm:$0xff]
    %v459 = vld [vmem:[#allocation5 + $0x40] sm:$0xff]
    %v460 = vld [vmem:[#allocation5 + $0x48] sm:$0xff]
    %v461 = vld [vmem:[#allocation5 + $0x50] sm:$0xff]
    %v462 = vld [vmem:[#allocation5 + $0x58] sm:$0xff]
    %v463 = vld [vmem:[#allocation5 + $0x60] sm:$0xff]
    %v464 = vld [vmem:[#allocation5 + $0x68] sm:$0xff]
    %v465 = vld [vmem:[#allocation5 + $0x70] sm:$0xff]
    %v466 = vld [vmem:[#allocation5 + $0x78] sm:$0xff]
    %v467 = vld [vmem:[%s8] sm:$0x3]
    %v469 = vlaneseq
    %v470 = vshrl.u32 %v469, 7
    %v471 = vsub.s32 0, %v470
    %v472 = vrot.slane %v467, %v471
    %v473 = vlaneseq
    %v474 = vshrl.u32 %v473, 7
    %v475 = vsub.s32 1, %v474
    %v476 = vrot.slane %v467, %v475
    %v495 = vunpack.c.l.b16 %v451
    %v496 = vunpack.c.h.b16 %v451
    %v497 = vunpack.c.l.b16 %v452
    %v498 = vunpack.c.h.b16 %v452
    %v499 = vunpack.c.l.b16 %v453
    %v500 = vunpack.c.h.b16 %v453
    %v501 = vunpack.c.l.b16 %v454
    %v502 = vunpack.c.h.b16 %v454
    %v503 = vunpack.c.l.b16 %v455
    %v504 = vunpack.c.h.b16 %v455
    %v505 = vunpack.c.l.b16 %v456
    %v506 = vunpack.c.h.b16 %v456
    %v507 = vunpack.c.l.b16 %v457
    %v508 = vunpack.c.h.b16 %v457
    %v509 = vunpack.c.l.b16 %v458
    %v510 = vunpack.c.h.b16 %v458
    %v511 = vunpack.c.l.b16 %v459
    %v512 = vunpack.c.h.b16 %v459
    %v513 = vunpack.c.l.b16 %v460
    %v514 = vunpack.c.h.b16 %v460
    %v515 = vunpack.c.l.b16 %v461
    %v516 = vunpack.c.h.b16 %v461
    %v517 = vunpack.c.l.b16 %v462
    %v518 = vunpack.c.h.b16 %v462
    %v519 = vunpack.c.l.b16 %v463
    %v520 = vunpack.c.h.b16 %v463
    %v521 = vunpack.c.l.b16 %v464
    %v522 = vunpack.c.h.b16 %v464
    %v523 = vunpack.c.l.b16 %v465
    %v524 = vunpack.c.h.b16 %v465
    %v525 = vunpack.c.l.b16 %v466
    %v526 = vunpack.c.h.b16 %v466
    %v527 = vpack.c.b16 %v497, %v495
    %v528 = vpack.c.b16 %v498, %v496
    %v529 = vpack.c.b16 %v501, %v499
    %v530 = vpack.c.b16 %v502, %v500
    %v531 = vpack.c.b16 %v505, %v503
    %v532 = vpack.c.b16 %v506, %v504
    %v533 = vpack.c.b16 %v509, %v507
    %v534 = vpack.c.b16 %v510, %v508
    %v535 = vpack.c.b16 %v513, %v511
    %v536 = vpack.c.b16 %v514, %v512
    %v537 = vpack.c.b16 %v517, %v515
    %v538 = vpack.c.b16 %v518, %v516
    %v539 = vpack.c.b16 %v521, %v519
    %v540 = vpack.c.b16 %v522, %v520
    %v541 = vpack.c.b16 %v525, %v523
    %v542 = vpack.c.b16 %v526, %v524
    %559 = vmatprep.subr.bf16.mxu0 %v528
    %560 = vmatpush1.bf16.msra.mxu0 %v527
    %561 = vmatprep.subr.bf16.mxu0 %v530
    %562 = vmatpush1.bf16.msra.mxu0 %v529
    %563 = vmatprep.subr.bf16.mxu0 %v532
    %564 = vmatpush1.bf16.msra.mxu0 %v531
    %565 = vmatprep.subr.bf16.mxu0 %v534
    %566 = vmatpush1.bf16.msra.mxu0 %v533
    %567 = vmatprep.subr.bf16.mxu0 %v536
    %568 = vmatpush1.bf16.msra.mxu0 %v535
    %569 = vmatprep.subr.bf16.mxu0 %v538
    %570 = vmatpush1.bf16.msra.mxu0 %v537
    %571 = vmatprep.subr.bf16.mxu0 %v540
    %572 = vmatpush1.bf16.msra.mxu0 %v539
    %573 = vmatprep.subr.bf16.mxu0 %v542
    %574 = vmatpush1.bf16.msra.mxu0 %v541
    %575 = vmatprep.subr.bf16.mxu0 0
    %576 = vmatpush1.bf16.msra.mxu0 0
    %577 = vmatprep.subr.bf16.mxu0 0
    %578 = vmatpush1.bf16.msra.mxu0 0
    %579 = vmatprep.subr.bf16.mxu0 0
    %580 = vmatpush1.bf16.msra.mxu0 0
    %581 = vmatprep.subr.bf16.mxu0 0
    %582 = vmatpush1.bf16.msra.mxu0 0
    %583 = vmatprep.subr.bf16.mxu0 0
    %584 = vmatpush1.bf16.msra.mxu0 0
    %585 = vmatprep.subr.bf16.mxu0 0
    %586 = vmatpush1.bf16.msra.mxu0 0
    %587 = vmatprep.subr.bf16.mxu0 0
    %588 = vmatpush1.bf16.msra.mxu0 0
    %589 = vmatprep.subr.bf16.mxu0 0
    %590 = vmatpush1.bf16.msra.mxu0 0
    %591 = vmatprep.mubr.bf16.mxu0 0
    %592 = vmatmul.mubr.bf16.gmra.mrb[0].mxu0 %v450
    %v593 = vpop.f32.mrb[0].mxu0
    %v594 = vadd.f32 %v472, %v593
    %v595 = vpop.f32.mrb[0].mxu0
    %v596 = vadd.f32 %v476, %v595
    %v597 = vpop.f32.mrb[0].mxu0
    %v598 = vpop.f32.mrb[0].mxu0
    %599 = vdwg.mxu0
    %v600 = vxor.u32 %v594, 2147483648
    %v601 = vxor.u32 %v596, 2147483648
    %v602 = vmul.f32 %v600, 1.442695
    %v603 = vpow.pop %v602
    %v604 = vmul.f32 %v601, 1.442695
    %v605 = vpow.pop %v604
    %v606 = vadd.f32 %v603, 1.0
    %v607 = vadd.f32 %v605, 1.0
    %v608 = vrcp.pop %v606
    %v609 = vmul.f32 1.0, %v608
    %v610 = vrcp.pop %v607
    %v611 = vmul.f32 1.0, %v610
    %v614 = vcombine.low %v609, %v611
    %v615 = vcombine.high %v609, %v611
    %v617 = vunpack.c.l.s4 1983009808
    %v618 = vunpack.c.0.s8 %v617
    %v619 = vlaneseq
    %v620 = vshrl.u32 %v619, 7
    %v621 = vsub.s32 %v618, %v620
    %v622 = vrot.slane %v614, %v621
    %v624 = vunpack.c.l.s4 1983009808
    %v625 = vunpack.c.0.s8 %v624
    %v626 = vlaneseq
    %v627 = vshrl.u32 %v626, 7
    %v628 = vsub.s32 %v625, %v627
    %v629 = vrot.slane %v615, %v628
    %v630 = vcombine.high %v622, %v622
    %v631 = vcombine.high %v629, %v629
    %636 = vst [vmem:[#allocation7] sm:$0xf] %v622
    %637 = vst [vmem:[#allocation7 + $0x4] sm:$0xf] %v630
    %638 = vst [vmem:[#allocation7 + $0x8] sm:$0xf] %v629
    %639 = vst [vmem:[#allocation7 + $0xc] sm:$0xf] %v631
    // Predicated region
    $region46: #{tpu_custom_call.1} parent=1 // pred_check
      _
    $region47: #{tpu_custom_call.1} parent=1 // pred_check_branch
      %641 = sbr.rel (0) target = $region49
    $region48: #{tpu_custom_call.1} parent=1 // pred_region
      %s643 = ssub.s32 256, 64
      %644 = vsyncadd [#allocation4], %s643
      %s645 = sshll.u32 [#allocation7], 4
      %s646 = int_to_ptr.vmem [resolvable:$true] %s645
      %651 = dma.vmem_to_hbm [thread:$0]  %s646, 64, %s9, [#allocation4], 64, 64, 4
    $region49: #{tpu_custom_call.1} parent=1 // pred_fallthru
      _
    // Predicated region
    $region50: #{tpu_custom_call.1} parent=1 // pred_check
      _
    $region51: #{tpu_custom_call.1} parent=1 // pred_check_branch
      %653 = sbr.rel (0) target = $region53
    $region52: #{tpu_custom_call.1} parent=1 // pred_region
      %654 = dma.done [#allocation4], 256
    $region53: #{tpu_custom_call.1} parent=1 // pred_fallthru
      _
    %655 = vsyncpa [#allocation3], 1
    %656 = vsyncpa [#allocation6], 1
    %657 = vsyncpa [#allocation4], 1

</llo_original>
